<compile_context>
chip_gen: v7x
topology: tpu7x:2x2x1
jax: 0.10.0
libtpu: 0.0.40
codegen_flags: <defaults>
</compile_context>

<pallas_src>
import jax
import jax.numpy as jnp
from jax import lax
from jax.experimental import pallas as pl
from jax.experimental.pallas import tpu as pltpu

# Model hyperparameters (reduced backbone + regression head).
C_IN = 3
C_OUT = 64
KH = KW = 3
NUM_CLASSES = 1
# Spatial size chosen so flatten matches nn.Linear(512, .): 64*(H//2)*(W//2)=512
B, H, W = 2, 4, 8
H2, W2 = H // 2, W // 2
K_COL = KH * KW * C_IN + 1          # +1: conv bias folded as extra im2col column
assert C_OUT * H2 * W2 == 512


def cnn_head_kernel(col_ref, wc_ref, wf_ref, bf_ref, out_ref):
    # --- Conv2d(3->64, k3, s1, p1): one im2col matmul (bias folded into the
    #     last K column) + fused ReLU.  Activation stays in vregs. ---
    act = jnp.maximum(
        jnp.dot(col_ref[...], wc_ref[...], preferred_element_type=jnp.float32),
        0.0)                                                  # [B*H*W, C_OUT]

    # --- MaxPool2d(2, 2), vectorized (VPU elementwise maxima). ---
    # Rows of `act` are ordered (b, h, w); channels live in the lane dim.
    a = act.reshape(B * H * W2, 2, C_OUT)                     # pair w = 2j, 2j+1
    wmax = jnp.maximum(a[:, 0, :], a[:, 1, :])                # [B*H*W2, C_OUT]
    b3 = wmax.reshape(B * H2, 2 * W2, C_OUT)                  # rows h=2i | h=2i+1
    pooled = jnp.maximum(b3[:, :W2, :], b3[:, W2:, :])        # [B*H2, W2, C_OUT]
    pooled = pooled.reshape(B, H2 * W2, C_OUT)                # [B, H2*W2, C_OUT]

    # --- Linear(512 -> NUM_CLASSES=1): one VPU multiply + lane/sublane
    #     reductions (replaces 32 tiny MXU dot_generals). ---
    weighted = pooled * wf_ref[...][None, :, :]               # [B, H2*W2, C_OUT]
    s = jnp.sum(weighted, axis=2)                             # lane reduce -> [B, H2*W2]
    out = jnp.sum(s, axis=1, keepdims=True) + bf_ref[0]       # [B, 1]
    out_ref[...] = out                                        # single store


@jax.jit
def cnn_head_forward(x_nchw, conv_w, conv_b, fc_w, fc_b):
    # ---- glue (pure data movement): NCHW->NHWC, pad, im2col, weight layout ----
    x = jnp.transpose(x_nchw, (0, 2, 3, 1))                   # NCHW -> NHWC
    xp = jnp.pad(x, ((0, 0), (1, 1), (1, 1), (0, 0)))
    patches = [xp[:, dh:dh + H, dw:dw + W, :]
               for dh in range(KH) for dw in range(KW)]
    col = jnp.concatenate(patches, axis=-1).reshape(B * H * W, KH * KW * C_IN)
    # Fold conv bias: append a ones column to col and conv_b as the last wc row.
    col = jnp.concatenate([col, jnp.ones((B * H * W, 1), jnp.float32)], axis=-1)

    # conv weight OIHW -> (kh, kw, c_in, c_out), matching the patch ordering.
    wc = jnp.transpose(conv_w, (2, 3, 1, 0)).reshape(KH * KW * C_IN, C_OUT)
    wc = jnp.concatenate([wc, conv_b.reshape(1, C_OUT)], axis=0)   # [K_COL, C_OUT]

    # fc weight's flat dim is ordered (c, i, j) because PyTorch flattens NCHW;
    # re-layout to [H2*W2, C_OUT] to match the pooled (i, j)-row / c-lane order.
    wf = fc_w.reshape(C_OUT, H2 * W2).T                            # NUM_CLASSES == 1
    bf = fc_b.reshape(1)

    return pl.pallas_call(
        cnn_head_kernel,
        out_shape=jax.ShapeDtypeStruct((B, NUM_CLASSES), jnp.float32),
        in_specs=[
            pl.BlockSpec(memory_space=pltpu.MemorySpace.VMEM),     # col  [64, 28]
            pl.BlockSpec(memory_space=pltpu.MemorySpace.VMEM),     # wc   [28, 64]
            pl.BlockSpec(memory_space=pltpu.MemorySpace.VMEM),     # wf   [ 8, 64]
            pl.BlockSpec(memory_space=pltpu.MemorySpace.SMEM),     # fc bias (1,)
        ],
        out_specs=pl.BlockSpec(memory_space=pltpu.MemorySpace.VMEM),
    )(col, wc, wf, bf)


def reference_forward(x, conv_w, conv_b, fc_w, fc_b):
    # Pure-JAX reference reproducing the PyTorch forward (NCHW).
    y = lax.conv_general_dilated(x, conv_w, (1, 1), ((1, 1), (1, 1)),
                                 dimension_numbers=('NCHW', 'OIHW', 'NCHW'))
    y = jnp.maximum(y + conv_b[None, :, None, None], 0.0)
    y = y.reshape(B, C_OUT, H2, 2, W2, 2).max(axis=(3, 5))
    return y.reshape(B, -1) @ fc_w.T + fc_b[None, :]


if __name__ == "__main__":
    key = jax.random.PRNGKey(0)
    kx, kw1, kb1, kw2, kb2 = jax.random.split(key, 5)
    x = jax.random.normal(kx, (B, C_IN, H, W), dtype=jnp.float32)
    conv_w = jax.random.uniform(kw1, (C_OUT, C_IN, KH, KW),
                                minval=-0.2, maxval=0.2, dtype=jnp.float32)
    conv_b = jax.random.uniform(kb1, (C_OUT,), minval=-0.2, maxval=0.2,
                                dtype=jnp.float32)
    fc_w = jax.random.uniform(kw2, (NUM_CLASSES, C_OUT * H2 * W2),
                              minval=-0.05, maxval=0.05, dtype=jnp.float32)
    fc_b = jax.random.uniform(kb2, (NUM_CLASSES,), minval=-0.05, maxval=0.05,
                              dtype=jnp.float32)

    out = jax.block_until_ready(cnn_head_forward(x, conv_w, conv_b, fc_w, fc_b))

    ref = reference_forward(x, conv_w, conv_b, fc_w, fc_b)
    assert out.shape == (B, NUM_CLASSES)
    assert jnp.allclose(out, ref, atol=1e-4, rtol=1e-4), (out, ref)
    print("KERNEL_OK")
</pallas_src>

<mosaic_0001>
module attributes {stable_mosaic.version = 11 : i64} {
  func.func @cnn_head_kernel(%arg0: memref<64x28xf32, #tpu.memory_space<vmem>>, %arg1: memref<28x64xf32, #tpu.memory_space<vmem>>, %arg2: memref<8x64xf32, #tpu.memory_space<vmem>>, %arg3: memref<1xf32, #tpu.memory_space<smem>>, %arg4: memref<2x1xf32, #tpu.memory_space<vmem>>) attributes {dimension_semantics = [], scalar_prefetch = 0 : i64, scratch_operands = 0 : i64, tpu.core_type = #tpu.core_type<tc>} {
    %c0 = arith.constant 0 : index
    %c0_0 = arith.constant 0 : index
    %0 = vector.load %arg0[%c0, %c0_0] : memref<64x28xf32, #tpu.memory_space<vmem>>, vector<64x28xf32>
    %c0_1 = arith.constant 0 : index
    %c0_2 = arith.constant 0 : index
    %1 = vector.load %arg1[%c0_1, %c0_2] : memref<28x64xf32, #tpu.memory_space<vmem>>, vector<28x64xf32>
    %cst = arith.constant dense<0.000000e+00> : vector<64x64xf32>
    %2 = tpu.matmul %0, %1, %cst {dimension_numbers = #tpu.dot_dimension_numbers<[1], [0], [0], [1], [0, 0, 1, 1], [], []>} : vector<64x28xf32>, vector<28x64xf32>, vector<64x64xf32> -> vector<64x64xf32>
    %cst_3 = arith.constant 0.000000e+00 : f32
    %3 = vector.broadcast %cst_3 : f32 to vector<64x64xf32>
    %4 = arith.maximumf %2, %3 : vector<64x64xf32>
    %5 = vector.shape_cast %4 : vector<64x64xf32> to vector<32x2x64xf32>
    %6 = vector.extract_strided_slice %5 {offsets = [0, 0, 0], sizes = [32, 1, 64], strides = [1, 1, 1]} : vector<32x2x64xf32> to vector<32x1x64xf32>
    %7 = vector.shape_cast %6 : vector<32x1x64xf32> to vector<32x64xf32>
    %8 = vector.extract_strided_slice %5 {offsets = [0, 1, 0], sizes = [32, 1, 64], strides = [1, 1, 1]} : vector<32x2x64xf32> to vector<32x1x64xf32>
    %9 = vector.shape_cast %8 : vector<32x1x64xf32> to vector<32x64xf32>
    %10 = arith.maximumf %7, %9 : vector<32x64xf32>
    %11 = vector.shape_cast %10 : vector<32x64xf32> to vector<4x8x64xf32>
    %12 = vector.extract_strided_slice %11 {offsets = [0, 0, 0], sizes = [4, 4, 64], strides = [1, 1, 1]} : vector<4x8x64xf32> to vector<4x4x64xf32>
    %13 = vector.extract_strided_slice %11 {offsets = [0, 4, 0], sizes = [4, 4, 64], strides = [1, 1, 1]} : vector<4x8x64xf32> to vector<4x4x64xf32>
    %14 = arith.maximumf %12, %13 : vector<4x4x64xf32>
    %15 = vector.shape_cast %14 : vector<4x4x64xf32> to vector<2x8x64xf32>
    %c0_4 = arith.constant 0 : index
    %c0_5 = arith.constant 0 : index
    %16 = vector.load %arg2[%c0_4, %c0_5] : memref<8x64xf32, #tpu.memory_space<vmem>>, vector<8x64xf32>
    %17 = vector.shape_cast %16 : vector<8x64xf32> to vector<1x8x64xf32>
    %18 = vector.broadcast %17 : vector<1x8x64xf32> to vector<2x8x64xf32>
    %19 = arith.mulf %15, %18 : vector<2x8x64xf32>
    %cst_6 = arith.constant dense<0.000000e+00> : vector<2x8xf32>
    %20 = vector.multi_reduction <add>, %19, %cst_6 [2] : vector<2x8x64xf32> to vector<2x8xf32>
    %cst_7 = arith.constant dense<0.000000e+00> : vector<2xf32>
    %21 = vector.multi_reduction <add>, %20, %cst_7 [1] : vector<2x8xf32> to vector<2xf32>
    %22 = vector.shape_cast %21 : vector<2xf32> to vector<2x1xf32>
    %c0_8 = arith.constant 0 : index
    %23 = memref.load %arg3[%c0_8] : memref<1xf32, #tpu.memory_space<smem>>
    %24 = vector.broadcast %23 : f32 to vector<2x1xf32>
    %25 = arith.addf %22, %24 : vector<2x1xf32>
    %c0_9 = arith.constant 0 : index
    %c0_10 = arith.constant 0 : index
    %26 = vector.load %arg4[%c0_9, %c0_10] : memref<2x1xf32, #tpu.memory_space<vmem>>, vector<2x1xf32>
    tpu.vector_store %arg4[%c0_9, %c0_10], %25 {strides = array<i32>} : memref<2x1xf32, #tpu.memory_space<vmem>>, vector<2x1xf32>,
    return
  }
}

</mosaic_0001>

<llo_original>
// kernel: cnn_head_forward.1
$region0: #{cnn_head_forward.1}
  #allocation0 [shape = 'u32[]', space=smem, size = 0x4, offset = 0x4, fixed_abs, tag = 'smem constant byte address 0x4 - core index']
  #allocation1 [shape = 'u32[144,128]{1,0:T(1,128)}', space=vmem, size = 0x12000, scoped, tag = 'internal scratch']
  #allocation2 [shape = 'f32[1]{0:T(128)S(6)}', space=smem, size = 0x200, scoped, tag = 'scoped memory for cnn_head_forward.1']
  %s0 = inlined_call_operand.vmem [shape: f32[64,28], index: 0, kind: input, shape index: {}]
  %s1 = inlined_call_operand.vmem [shape: f32[28,64], index: 1, kind: input, shape index: {}]
  %s2 = inlined_call_operand.vmem [shape: f32[8,64], index: 2, kind: input, shape index: {}]
  %s3 = inlined_call_operand.<no memory space> [shape: f32[1], index: 3, kind: input, shape index: {}]
  %s4 = inlined_call_operand.vmem [shape: f32[2,1], index: 4, kind: output, shape index: {}]
  %s5 = sld [smem:[#allocation0]]
  $region26: #{cnn_head_forward.1} parent=0
    _
  %s7 = ssub.s32 1, %s5
  %s8 = scalar_select 0, %s7, %s5
  %9 = sst [smem:[#allocation2]] %s3
  // Predicated region
  $region2: #{cnn_head_forward.1} parent=0 // pred_check
    _
  $region3: #{cnn_head_forward.1} parent=0 // pred_check_branch
    %11 = sbr.rel (0) target = $region5
  $region4: #{cnn_head_forward.1} parent=0 // pred_region
    _
  $region5: #{cnn_head_forward.1} parent=0 // pred_fallthru
    _
  // Predicated region
  $region6: #{cnn_head_forward.1} parent=0 // pred_check
    _
  $region7: #{cnn_head_forward.1} parent=0 // pred_check_branch
    %13 = sbr.rel (0) target = $region9
  $region8: #{cnn_head_forward.1} parent=0 // pred_region
    _
  $region9: #{cnn_head_forward.1} parent=0 // pred_fallthru
    _
  // Predicated region
  $region10: #{cnn_head_forward.1} parent=0 // pred_check
    _
  $region11: #{cnn_head_forward.1} parent=0 // pred_check_branch
    %15 = sbr.rel (0) target = $region13
  $region12: #{cnn_head_forward.1} parent=0 // pred_region
    _
  $region13: #{cnn_head_forward.1} parent=0 // pred_fallthru
    _
  // Predicated region
  $region14: #{cnn_head_forward.1} parent=0 // pred_check
    _
  $region15: #{cnn_head_forward.1} parent=0 // pred_check_branch
    %17 = sbr.rel (0) target = $region17
  $region16: #{cnn_head_forward.1} parent=0 // pred_region
    _
  $region17: #{cnn_head_forward.1} parent=0 // pred_fallthru
    _
  %v18 = vld [vmem:[%s0] sm:$0xff]
  %v19 = vld [vmem:[%s0 + $0x8] sm:$0xff]
  %v20 = vld [vmem:[%s0 + $0x10] sm:$0xff]
  %v21 = vld [vmem:[%s0 + $0x18] sm:$0xff]
  %v22 = vld [vmem:[%s0 + $0x20] sm:$0xff]
  %v23 = vld [vmem:[%s0 + $0x28] sm:$0xff]
  %v24 = vld [vmem:[%s0 + $0x30] sm:$0xff]
  %v25 = vld [vmem:[%s0 + $0x38] sm:$0xff]
  %v26 = vld [vmem:[%s1] sm:$0xff]
  %v27 = vld [vmem:[%s1 + $0x8] sm:$0xff]
  %v28 = vld [vmem:[%s1 + $0x10] sm:$0xff]
  %v29 = vld [vmem:[%s1 + $0x18] sm:$0xf]
  %vm30 = vcmask 228352
  %v32 = vsel %vm30, %v18, 0
  %v35 = vsel %vm30, %v19, 0
  %v38 = vsel %vm30, %v20, 0
  %v41 = vsel %vm30, %v21, 0
  %v44 = vsel %vm30, %v22, 0
  %v47 = vsel %vm30, %v23, 0
  %v50 = vsel %vm30, %v24, 0
  %v53 = vsel %vm30, %v25, 0
  %vm55 = vcmask 1043456
  %v57 = vsel %vm55, %v29, 0
  %59 = vmatprep.subr.mxu0 0.0
  %60 = vmatpush1.msra.mxu0 %v26
  %61 = vmatprep.subr.mxu0 0.0
  %62 = vmatpush1.msra.mxu0 %v27
  %63 = vmatprep.subr.mxu0 0.0
  %64 = vmatpush1.msra.mxu0 %v28
  %65 = vmatprep.subr.mxu0 0.0
  %66 = vmatpush1.msra.mxu0 %v57
  %67 = vmatprep.subr.mxu0 0.0
  %68 = vmatpush1.msra.mxu0 0.0
  %69 = vmatprep.subr.mxu0 0.0
  %70 = vmatpush1.msra.mxu0 0.0
  %71 = vmatprep.subr.mxu0 0.0
  %72 = vmatpush1.msra.mxu0 0.0
  %73 = vmatprep.subr.mxu0 0.0
  %74 = vmatpush1.msra.mxu0 0.0
  %75 = vmatprep.subr.mxu0 0.0
  %76 = vmatpush1.msra.mxu0 0.0
  %77 = vmatprep.subr.mxu0 0.0
  %78 = vmatpush1.msra.mxu0 0.0
  %79 = vmatprep.subr.mxu0 0.0
  %80 = vmatpush1.msra.mxu0 0.0
  %81 = vmatprep.subr.mxu0 0.0
  %82 = vmatpush1.msra.mxu0 0.0
  %83 = vmatprep.subr.mxu0 0.0
  %84 = vmatpush1.msra.mxu0 0.0
  %85 = vmatprep.subr.mxu0 0.0
  %86 = vmatpush1.msra.mxu0 0.0
  %87 = vmatprep.subr.mxu0 0.0
  %88 = vmatpush1.msra.mxu0 0.0
  %89 = vmatprep.subr.mxu0 0.0
  %90 = vmatpush1.msra.mxu0 0.0
  %91 = vmatprep.subr.mxu0 0.0
  %92 = vmatpush1.msra.mxu0 0.0
  %93 = vmatprep.subr.mxu0 0.0
  %94 = vmatpush1.msra.mxu0 0.0
  %95 = vmatprep.subr.mxu0 0.0
  %96 = vmatpush1.msra.mxu0 0.0
  %97 = vmatprep.subr.mxu0 0.0
  %98 = vmatpush1.msra.mxu0 0.0
  %99 = vmatprep.subr.mxu0 0.0
  %100 = vmatpush1.msra.mxu0 0.0
  %101 = vmatprep.subr.mxu0 0.0
  %102 = vmatpush1.msra.mxu0 0.0
  %103 = vmatprep.subr.mxu0 0.0
  %104 = vmatpush1.msra.mxu0 0.0
  %105 = vmatprep.subr.mxu0 0.0
  %106 = vmatpush1.msra.mxu0 0.0
  %107 = vmatprep.subr.mxu0 0.0
  %108 = vmatpush1.msra.mxu0 0.0
  %109 = vmatprep.subr.mxu0 0.0
  %110 = vmatpush1.msra.mxu0 0.0
  %111 = vmatprep.subr.mxu0 0.0
  %112 = vmatpush1.msra.mxu0 0.0
  %113 = vmatprep.subr.mxu0 0.0
  %114 = vmatpush1.msra.mxu0 0.0
  %115 = vmatprep.subr.mxu0 0.0
  %116 = vmatpush1.msra.mxu0 0.0
  %117 = vmatprep.subr.mxu0 0.0
  %118 = vmatpush1.msra.mxu0 0.0
  %119 = vmatprep.subr.mxu0 0.0
  %120 = vmatpush1.msra.mxu0 0.0
  %121 = vmatprep.subr.mxu0 0.0
  %122 = vmatpush1.msra.mxu0 0.0
  %123 = vmatprep.mubr.f32.mxu0 0.0
  %124 = vmatmul.mubr.f32.gmra.mrb[0].mxu0 %v32
  %v125 = vpop.f32.mrb[0].mxu0
  %v126 = vadd.f32 0.0, %v125
  %v127 = vpop.f32.mrb[0].mxu0
  %128 = vmatprep.mubr.f32.mxu0 0.0
  %129 = vmatmul.mubr.f32.gmra.mrb[0].mxu0 %v35
  %v130 = vpop.f32.mrb[0].mxu0
  %v131 = vadd.f32 0.0, %v130
  %v132 = vpop.f32.mrb[0].mxu0
  %133 = vmatprep.mubr.f32.mxu0 0.0
  %134 = vmatmul.mubr.f32.gmra.mrb[0].mxu0 %v38
  %v135 = vpop.f32.mrb[0].mxu0
  %v136 = vadd.f32 0.0, %v135
  %v137 = vpop.f32.mrb[0].mxu0
  %138 = vmatprep.mubr.f32.mxu0 0.0
  %139 = vmatmul.mubr.f32.gmra.mrb[0].mxu0 %v41
  %v140 = vpop.f32.mrb[0].mxu0
  %v141 = vadd.f32 0.0, %v140
  %v142 = vpop.f32.mrb[0].mxu0
  %143 = vmatprep.mubr.f32.mxu0 0.0
  %144 = vmatmul.mubr.f32.gmra.mrb[0].mxu0 %v44
  %v145 = vpop.f32.mrb[0].mxu0
  %v146 = vadd.f32 0.0, %v145
  %v147 = vpop.f32.mrb[0].mxu0
  %148 = vmatprep.mubr.f32.mxu0 0.0
  %149 = vmatmul.mubr.f32.gmra.mrb[0].mxu0 %v47
  %v150 = vpop.f32.mrb[0].mxu0
  %v151 = vadd.f32 0.0, %v150
  %v152 = vpop.f32.mrb[0].mxu0
  %153 = vmatprep.mubr.f32.mxu0 0.0
  %154 = vmatmul.mubr.f32.gmra.mrb[0].mxu0 %v50
  %v155 = vpop.f32.mrb[0].mxu0
  %v156 = vadd.f32 0.0, %v155
  %v157 = vpop.f32.mrb[0].mxu0
  %158 = vmatprep.mubr.f32.mxu0 0.0
  %159 = vmatmul.mubr.f32.gmra.mrb[0].mxu0 %v53
  %v160 = vpop.f32.mrb[0].mxu0
  %v161 = vadd.f32 0.0, %v160
  %v162 = vpop.f32.mrb[0].mxu0
  %163 = vdwg.mxu0
  %v164 = vmax.f32 %v126, 0.0
  %v165 = vmax.f32 %v131, 0.0
  %v166 = vmax.f32 %v136, 0.0
  %v167 = vmax.f32 %v141, 0.0
  %v168 = vmax.f32 %v146, 0.0
  %v169 = vmax.f32 %v151, 0.0
  %v170 = vmax.f32 %v156, 0.0
  %v171 = vmax.f32 %v161, 0.0
  %v180 = vcombine.high %v164, %v164
  %v182 = vunpack.c.l.s4 1983009808
  %v183 = vunpack.c.0.s8 %v182
  %v184 = vlaneseq
  %v185 = vshrl.u32 %v184, 7
  %v186 = vsub.s32 %v183, %v185
  %v187 = vrot.slane %v164, %v186
  %v189 = vunpack.c.l.s4 1983009808
  %v190 = vunpack.c.0.s8 %v189
  %v191 = vlaneseq
  %v192 = vshrl.u32 %v191, 7
  %v193 = vsub.s32 %v190, %v192
  %v194 = vrot.slane %v180, %v193
  %v195 = vcombine.high %v187, %v187
  %v196 = vcombine.high %v194, %v194
  %v197 = vcombine.high %v165, %v165
  %v199 = vunpack.c.l.s4 1983009808
  %v200 = vunpack.c.0.s8 %v199
  %v201 = vlaneseq
  %v202 = vshrl.u32 %v201, 7
  %v203 = vsub.s32 %v200, %v202
  %v204 = vrot.slane %v165, %v203
  %v206 = vunpack.c.l.s4 1983009808
  %v207 = vunpack.c.0.s8 %v206
  %v208 = vlaneseq
  %v209 = vshrl.u32 %v208, 7
  %v210 = vsub.s32 %v207, %v209
  %v211 = vrot.slane %v197, %v210
  %v212 = vcombine.high %v204, %v204
  %v213 = vcombine.high %v211, %v211
  %v214 = vcombine.high %v166, %v166
  %v216 = vunpack.c.l.s4 1983009808
  %v217 = vunpack.c.0.s8 %v216
  %v218 = vlaneseq
  %v219 = vshrl.u32 %v218, 7
  %v220 = vsub.s32 %v217, %v219
  %v221 = vrot.slane %v166, %v220
  %v223 = vunpack.c.l.s4 1983009808
  %v224 = vunpack.c.0.s8 %v223
  %v225 = vlaneseq
  %v226 = vshrl.u32 %v225, 7
  %v227 = vsub.s32 %v224, %v226
  %v228 = vrot.slane %v214, %v227
  %v229 = vcombine.high %v221, %v221
  %v230 = vcombine.high %v228, %v228
  %v231 = vcombine.high %v167, %v167
  %v233 = vunpack.c.l.s4 1983009808
  %v234 = vunpack.c.0.s8 %v233
  %v235 = vlaneseq
  %v236 = vshrl.u32 %v235, 7
  %v237 = vsub.s32 %v234, %v236
  %v238 = vrot.slane %v167, %v237
  %v240 = vunpack.c.l.s4 1983009808
  %v241 = vunpack.c.0.s8 %v240
  %v242 = vlaneseq
  %v243 = vshrl.u32 %v242, 7
  %v244 = vsub.s32 %v241, %v243
  %v245 = vrot.slane %v231, %v244
  %v246 = vcombine.high %v238, %v238
  %v247 = vcombine.high %v245, %v245
  %v248 = vcombine.high %v168, %v168
  %v250 = vunpack.c.l.s4 1983009808
  %v251 = vunpack.c.0.s8 %v250
  %v252 = vlaneseq
  %v253 = vshrl.u32 %v252, 7
  %v254 = vsub.s32 %v251, %v253
  %v255 = vrot.slane %v168, %v254
  %v257 = vunpack.c.l.s4 1983009808
  %v258 = vunpack.c.0.s8 %v257
  %v259 = vlaneseq
  %v260 = vshrl.u32 %v259, 7
  %v261 = vsub.s32 %v258, %v260
  %v262 = vrot.slane %v248, %v261
  %v263 = vcombine.high %v255, %v255
  %v264 = vcombine.high %v262, %v262
  %v265 = vcombine.high %v169, %v169
  %v267 = vunpack.c.l.s4 1983009808
  %v268 = vunpack.c.0.s8 %v267
  %v269 = vlaneseq
  %v270 = vshrl.u32 %v269, 7
  %v271 = vsub.s32 %v268, %v270
  %v272 = vrot.slane %v169, %v271
  %v274 = vunpack.c.l.s4 1983009808
  %v275 = vunpack.c.0.s8 %v274
  %v276 = vlaneseq
  %v277 = vshrl.u32 %v276, 7
  %v278 = vsub.s32 %v275, %v277
  %v279 = vrot.slane %v265, %v278
  %v280 = vcombine.high %v272, %v272
  %v281 = vcombine.high %v279, %v279
  %v282 = vcombine.high %v170, %v170
  %v284 = vunpack.c.l.s4 1983009808
  %v285 = vunpack.c.0.s8 %v284
  %v286 = vlaneseq
  %v287 = vshrl.u32 %v286, 7
  %v288 = vsub.s32 %v285, %v287
  %v289 = vrot.slane %v170, %v288
  %v291 = vunpack.c.l.s4 1983009808
  %v292 = vunpack.c.0.s8 %v291
  %v293 = vlaneseq
  %v294 = vshrl.u32 %v293, 7
  %v295 = vsub.s32 %v292, %v294
  %v296 = vrot.slane %v282, %v295
  %v297 = vcombine.high %v289, %v289
  %v298 = vcombine.high %v296, %v296
  %v299 = vcombine.high %v171, %v171
  %v301 = vunpack.c.l.s4 1983009808
  %v302 = vunpack.c.0.s8 %v301
  %v303 = vlaneseq
  %v304 = vshrl.u32 %v303, 7
  %v305 = vsub.s32 %v302, %v304
  %v306 = vrot.slane %v171, %v305
  %v308 = vunpack.c.l.s4 1983009808
  %v309 = vunpack.c.0.s8 %v308
  %v310 = vlaneseq
  %v311 = vshrl.u32 %v310, 7
  %v312 = vsub.s32 %v309, %v311
  %v313 = vrot.slane %v299, %v312
  %v314 = vcombine.high %v306, %v306
  %v315 = vcombine.high %v313, %v313
  %v348 = vrot.slane %v187, 7
  %v349 = vrot.slane %v348, 2
  %v350 = vrot.slane %v195, 7
  %v351 = vrot.slane %v350, 2
  %v352 = vrot.slane %v194, 7
  %v353 = vrot.slane %v352, 2
  %v354 = vrot.slane %v196, 7
  %v355 = vrot.slane %v354, 2
  %v356 = vrot.slane %v204, 7
  %v357 = vrot.slane %v356, 2
  %v358 = vrot.slane %v212, 7
  %v359 = vrot.slane %v358, 2
  %v360 = vrot.slane %v211, 7
  %v361 = vrot.slane %v360, 2
  %v362 = vrot.slane %v213, 7
  %v363 = vrot.slane %v362, 2
  %v364 = vrot.slane %v221, 7
  %v365 = vrot.slane %v364, 2
  %v366 = vrot.slane %v229, 7
  %v367 = vrot.slane %v366, 2
  %v368 = vrot.slane %v228, 7
  %v369 = vrot.slane %v368, 2
  %v370 = vrot.slane %v230, 7
  %v371 = vrot.slane %v370, 2
  %v372 = vrot.slane %v238, 7
  %v373 = vrot.slane %v372, 2
  %v374 = vrot.slane %v246, 7
  %v375 = vrot.slane %v374, 2
  %v376 = vrot.slane %v245, 7
  %v377 = vrot.slane %v376, 2
  %v378 = vrot.slane %v247, 7
  %v379 = vrot.slane %v378, 2
  %v380 = vrot.slane %v255, 7
  %v381 = vrot.slane %v380, 2
  %v382 = vrot.slane %v263, 7
  %v383 = vrot.slane %v382, 2
  %v384 = vrot.slane %v262, 7
  %v385 = vrot.slane %v384, 2
  %v386 = vrot.slane %v264, 7
  %v387 = vrot.slane %v386, 2
  %v388 = vrot.slane %v272, 7
  %v389 = vrot.slane %v388, 2
  %v390 = vrot.slane %v280, 7
  %v391 = vrot.slane %v390, 2
  %v392 = vrot.slane %v279, 7
  %v393 = vrot.slane %v392, 2
  %v394 = vrot.slane %v281, 7
  %v395 = vrot.slane %v394, 2
  %v396 = vrot.slane %v289, 7
  %v397 = vrot.slane %v396, 2
  %v398 = vrot.slane %v297, 7
  %v399 = vrot.slane %v398, 2
  %v400 = vrot.slane %v296, 7
  %v401 = vrot.slane %v400, 2
  %v402 = vrot.slane %v298, 7
  %v403 = vrot.slane %v402, 2
  %v404 = vrot.slane %v306, 7
  %v405 = vrot.slane %v404, 2
  %v406 = vrot.slane %v314, 7
  %v407 = vrot.slane %v406, 2
  %v408 = vrot.slane %v313, 7
  %v409 = vrot.slane %v408, 2
  %v410 = vrot.slane %v315, 7
  %v411 = vrot.slane %v410, 2
  %v444 = vmax.f32 %v187, %v349
  %v445 = vmax.f32 %v195, %v351
  %v446 = vmax.f32 %v194, %v353
  %v447 = vmax.f32 %v196, %v355
  %v448 = vmax.f32 %v204, %v357
  %v449 = vmax.f32 %v212, %v359
  %v450 = vmax.f32 %v211, %v361
  %v451 = vmax.f32 %v213, %v363
  %v452 = vmax.f32 %v221, %v365
  %v453 = vmax.f32 %v229, %v367
  %v454 = vmax.f32 %v228, %v369
  %v455 = vmax.f32 %v230, %v371
  %v456 = vmax.f32 %v238, %v373
  %v457 = vmax.f32 %v246, %v375
  %v458 = vmax.f32 %v245, %v377
  %v459 = vmax.f32 %v247, %v379
  %v460 = vmax.f32 %v255, %v381
  %v461 = vmax.f32 %v263, %v383
  %v462 = vmax.f32 %v262, %v385
  %v463 = vmax.f32 %v264, %v387
  %v464 = vmax.f32 %v272, %v389
  %v465 = vmax.f32 %v280, %v391
  %v466 = vmax.f32 %v279, %v393
  %v467 = vmax.f32 %v281, %v395
  %v468 = vmax.f32 %v289, %v397
  %v469 = vmax.f32 %v297, %v399
  %v470 = vmax.f32 %v296, %v401
  %v471 = vmax.f32 %v298, %v403
  %v472 = vmax.f32 %v306, %v405
  %v473 = vmax.f32 %v314, %v407
  %v474 = vmax.f32 %v313, %v409
  %v475 = vmax.f32 %v315, %v411
  %v476 = vmax.f32 %v444, %v448
  %v477 = vmax.f32 %v445, %v449
  %v478 = vmax.f32 %v446, %v450
  %v479 = vmax.f32 %v447, %v451
  %v480 = vmax.f32 %v452, %v456
  %v481 = vmax.f32 %v453, %v457
  %v482 = vmax.f32 %v454, %v458
  %v483 = vmax.f32 %v455, %v459
  %v484 = vmax.f32 %v460, %v464
  %v485 = vmax.f32 %v461, %v465
  %v486 = vmax.f32 %v462, %v466
  %v487 = vmax.f32 %v463, %v467
  %v488 = vmax.f32 %v468, %v472
  %v489 = vmax.f32 %v469, %v473
  %v490 = vmax.f32 %v470, %v474
  %v491 = vmax.f32 %v471, %v475
  %v492 = vld [vmem:[%s2] sm:$0xff]
  %v494 = vcombine.high %v492, %v492
  %v496 = vunpack.c.l.s4 1983009808
  %v497 = vunpack.c.0.s8 %v496
  %v498 = vlaneseq
  %v499 = vshrl.u32 %v498, 7
  %v500 = vsub.s32 %v497, %v499
  %v501 = vrot.slane %v492, %v500
  %v503 = vunpack.c.l.s4 1983009808
  %v504 = vunpack.c.0.s8 %v503
  %v505 = vlaneseq
  %v506 = vshrl.u32 %v505, 7
  %v507 = vsub.s32 %v504, %v506
  %v508 = vrot.slane %v494, %v507
  %v509 = vcombine.high %v501, %v501
  %v510 = vcombine.high %v508, %v508
  %v511 = vrot.slane %v501, 1
  %v512 = vrot.slane %v509, 1
  %v513 = vrot.slane %v508, 1
  %v514 = vrot.slane %v510, 1
  %v523 = vmul.f32 %v476, %v501
  %v524 = vmul.f32 %v477, %v511
  %v525 = vmul.f32 %v478, %v509
  %v526 = vmul.f32 %v479, %v512
  %v527 = vmul.f32 %v480, %v508
  %v528 = vmul.f32 %v481, %v513
  %v529 = vmul.f32 %v482, %v510
  %v530 = vmul.f32 %v483, %v514
  %v531 = vmul.f32 %v484, %v501
  %v532 = vmul.f32 %v485, %v511
  %v533 = vmul.f32 %v486, %v509
  %v534 = vmul.f32 %v487, %v512
  %v535 = vmul.f32 %v488, %v508
  %v536 = vmul.f32 %v489, %v513
  %v537 = vmul.f32 %v490, %v510
  %v538 = vmul.f32 %v491, %v514
  %v555 = vlaneseq
  %v556 = vshrl.u32 %v555, 7
  %v557 = vsub.s32 0, %v556
  %v558 = vrot.slane %v523, %v557
  %v559 = vlaneseq
  %v560 = vshrl.u32 %v559, 7
  %v561 = vsub.s32 0, %v560
  %v562 = vrot.slane %v524, %v561
  %v563 = vlaneseq
  %v564 = vshrl.u32 %v563, 7
  %v565 = vsub.s32 0, %v564
  %v566 = vrot.slane %v525, %v565
  %v567 = vlaneseq
  %v568 = vshrl.u32 %v567, 7
  %v569 = vsub.s32 0, %v568
  %v570 = vrot.slane %v526, %v569
  %v571 = vlaneseq
  %v572 = vshrl.u32 %v571, 7
  %v573 = vsub.s32 0, %v572
  %v574 = vrot.slane %v527, %v573
  %v575 = vlaneseq
  %v576 = vshrl.u32 %v575, 7
  %v577 = vsub.s32 0, %v576
  %v578 = vrot.slane %v528, %v577
  %v579 = vlaneseq
  %v580 = vshrl.u32 %v579, 7
  %v581 = vsub.s32 0, %v580
  %v582 = vrot.slane %v529, %v581
  %v583 = vlaneseq
  %v584 = vshrl.u32 %v583, 7
  %v585 = vsub.s32 0, %v584
  %v586 = vrot.slane %v530, %v585
  %v587 = vlaneseq
  %v588 = vshrl.u32 %v587, 7
  %v589 = vsub.s32 0, %v588
  %v590 = vrot.slane %v531, %v589
  %v591 = vlaneseq
  %v592 = vshrl.u32 %v591, 7
  %v593 = vsub.s32 0, %v592
  %v594 = vrot.slane %v532, %v593
  %v595 = vlaneseq
  %v596 = vshrl.u32 %v595, 7
  %v597 = vsub.s32 0, %v596
  %v598 = vrot.slane %v533, %v597
  %v599 = vlaneseq
  %v600 = vshrl.u32 %v599, 7
  %v601 = vsub.s32 0, %v600
  %v602 = vrot.slane %v534, %v601
  %v603 = vlaneseq
  %v604 = vshrl.u32 %v603, 7
  %v605 = vsub.s32 0, %v604
  %v606 = vrot.slane %v535, %v605
  %v607 = vlaneseq
  %v608 = vshrl.u32 %v607, 7
  %v609 = vsub.s32 0, %v608
  %v610 = vrot.slane %v536, %v609
  %v611 = vlaneseq
  %v612 = vshrl.u32 %v611, 7
  %v613 = vsub.s32 0, %v612
  %v614 = vrot.slane %v537, %v613
  %v615 = vlaneseq
  %v616 = vshrl.u32 %v615, 7
  %v617 = vsub.s32 0, %v616
  %v618 = vrot.slane %v538, %v617
  %vm619 = vcmask 1041409
  %v620 = vsel %vm619, %v562, %v558
  %vm621 = vcmask 1042434
  %v622 = vsel %vm621, %v566, %v620
  %vm623 = vcmask 1043459
  %v624 = vsel %vm623, %v570, %v622
  %vm625 = vcmask 1044484
  %v626 = vsel %vm625, %v574, %v624
  %vm627 = vcmask 1045509
  %v628 = vsel %vm627, %v578, %v626
  %vm629 = vcmask 1046534
  %v630 = vsel %vm629, %v582, %v628
  %vm631 = vcmask 1047559
  %v632 = vsel %vm631, %v586, %v630
  %v633 = vsel %vm619, %v594, %v590
  %v634 = vsel %vm621, %v598, %v633
  %v635 = vsel %vm623, %v602, %v634
  %v636 = vsel %vm625, %v606, %v635
  %v637 = vsel %vm627, %v610, %v636
  %v638 = vsel %vm629, %v614, %v637
  %v639 = vsel %vm631, %v618, %v638
  %vm642 = vcmask 523264
  %v643 = vsel %vm642, %v632, 0.0
  %644 = vadd.xlane.f32.xlu0 %v643
  %v645 = vpop.xlane.xlu0 %644
  %v646 = vsel %vm642, %v639, 0.0
  %647 = vadd.xlane.f32.xlu0 %v646
  %v648 = vpop.xlane.xlu0 %647
  %v651 = vlaneseq
  %v652 = vand.u32 %v651, 127
  %v653 = vlaneseq
  %v654 = vshrl.u32 %v653, 7
  %v655 = vsub.s32 %v652, %v654
  %v656 = vrot.slane %v645, %v655
  %v657 = vlaneseq
  %v658 = vshrl.u32 %v657, 7
  %v659 = vsub.s32 %v652, %v658
  %v660 = vrot.slane %v648, %v659
  %v661 = vsel %vm619, %v660, %v656
  %vm663 = vcmask 58368
  %v664 = vsel %vm663, %v661, 0.0
  %665 = vadd.xlane.f32.xlu0 %v664
  %v666 = vpop.xlane.xlu0 %665
  %s667 = sld [smem:[#allocation2]]
  %v668 = vstv %s667
  %v669 = vadd.f32 %v666, %v668
  %vm670 = vcmask 1024
  %671 = vst.msk [vmem:[%s4] sm:$0x3] %vm670, %v669
  // Predicated region
  $region18: #{cnn_head_forward.1} parent=0 // pred_check
    _
  $region19: #{cnn_head_forward.1} parent=0 // pred_check_branch
    %673 = sbr.rel (0) target = $region21
  $region20: #{cnn_head_forward.1} parent=0 // pred_region
    _
  $region21: #{cnn_head_forward.1} parent=0 // pred_fallthru
    _
  // Predicated region
  $region22: #{cnn_head_forward.1} parent=0 // pred_check
    _
  $region23: #{cnn_head_forward.1} parent=0 // pred_check_branch
    %675 = sbr.rel (0) target = $region25
  $region24: #{cnn_head_forward.1} parent=0 // pred_region
    _
  $region25: #{cnn_head_forward.1} parent=0 // pred_fallthru
    _

</llo_original>
